<compile_context>
chip_gen: v7x
topology: tpu7x:2x2x1
jax: 0.10.0
libtpu: 0.0.40
codegen_flags: <defaults>
</compile_context>

<pallas_src>
import functools

import jax
import jax.numpy as jnp
from jax.experimental import pallas as pl
from jax.experimental.pallas import tpu as pltpu


def _pick_tile(n: int, candidates) -> int:
    """Largest candidate tile that evenly divides n, else the full extent."""
    for t in candidates:
        if t <= n and n % t == 0:
            return t
    return n


# --------------------------------------------------------------------------
# Kernel 1: one-time row L2 normalization (torch F.normalize, p=2, eps=1e-12)
# --------------------------------------------------------------------------
def _normalize_kernel(x_ref, o_ref):
    x = x_ref[...].astype(jnp.float32)
    sumsq = jnp.sum(x * x, axis=-1, keepdims=True)
    # 1/sqrt(max(sumsq, eps^2)) == 1/max(sqrt(sumsq), eps)  (sqrt is monotone)
    inv = jax.lax.rsqrt(jnp.maximum(sumsq, jnp.float32(1e-24)))
    o_ref[...] = (x * inv).astype(o_ref.dtype)


def normalize_rows_pallas(x: jax.Array) -> jax.Array:
    n, d = x.shape
    tm = _pick_tile(n, (512, 256, 128, 64, 32, 16, 8))
    return pl.pallas_call(
        _normalize_kernel,
        out_shape=jax.ShapeDtypeStruct((n, d), x.dtype),
        grid_spec=pltpu.PrefetchScalarGridSpec(
            num_scalar_prefetch=0,
            grid=(n // tm,),
            in_specs=[pl.BlockSpec((tm, d), lambda i: (i, 0))],
            out_specs=pl.BlockSpec((tm, d), lambda i: (i, 0)),
        ),
        compiler_params=pltpu.CompilerParams(dimension_semantics=("parallel",)),
    )(x)


# --------------------------------------------------------------------------
# Kernel 2: fused tiled similarity (diag zeroed) + streaming per-row top-k
# --------------------------------------------------------------------------
def _knn_topk_kernel(xi_ref, xj_ref, vals_ref, inds_ref, rv_ref, ri_ref,
                     *, tm, tn, k):
    # xi_ref:   (tm, D)  normalized row tile
    # xj_ref:   (tn, D)  normalized column tile
    # vals_ref: (tm, k)  output top-k values   (resident across column axis)
    # inds_ref: (tm, k)  output top-k indices  (resident across column axis)
    # rv_ref:   (tm, PAD) running top-k values  (scratch, lane-padded, -inf filled)
    # ri_ref:   (tm, PAD) running top-k indices (scratch)
    i = pl.program_id(0)
    j = pl.program_id(1)

    @pl.when(j == 0)
    def _init():
        rv_ref[...] = jnp.full_like(rv_ref, -jnp.inf)
        ri_ref[...] = jnp.zeros_like(ri_ref)

    # Contract over the feature axis of both operands directly (no .T materialized).
    s = jax.lax.dot_general(
        xi_ref[...],
        xj_ref[...],
        dimension_numbers=(((1,), (1,)), ((), ())),
        preferred_element_type=jnp.float32,
    )

    row0 = i * tm
    col0 = j * tn
    rg = row0 + jax.lax.broadcasted_iota(jnp.int32, (tm, tn), 0)
    cg = col0 + jax.lax.broadcasted_iota(jnp.int32, (tm, tn), 1)
    # fill_diagonal_(0.0): diagonal entries become value 0.0 (NOT excluded).
    s = jnp.where(rg == cg, jnp.float32(0.0), s)

    # Whole-tile skip: if no element of this tile exceeds any row's current
    # k-th value, the merge cannot change the running top-k.
    needs_merge = jnp.max(s) > jnp.min(rv_ref[:, k - 1:k])

    @pl.when(needs_merge)
    def _merge():
        # Candidate set = running top-k (lower global indices first) ++ tile.
        buf_v = jnp.concatenate([rv_ref[...], s], axis=-1)     # (tm, PAD + tn)
        buf_i = jnp.concatenate([ri_ref[...], cg], axis=-1)
        pos = jax.lax.broadcasted_iota(jnp.int32, buf_v.shape, 1)
        neg_inf = jnp.float32(-jnp.inf)
        big = jnp.int32(2 ** 30)
        new_v, new_i = [], []
        for _ in range(k):  # k small & static -> unrolled iterative argmax
            m = jnp.max(buf_v, axis=-1, keepdims=True)                      # (tm, 1)
            sel_pos = jnp.min(jnp.where(buf_v == m, pos, big),
                              axis=-1, keepdims=True)                       # lowest idx tie-break
            sel = pos == sel_pos
            idx = jnp.sum(jnp.where(sel, buf_i, 0), axis=-1, keepdims=True)  # (tm, 1)
            new_v.append(m)
            new_i.append(idx)
            buf_v = jnp.where(sel, neg_inf, buf_v)
        rv_ref[:, pl.ds(0, k)] = jnp.concatenate(new_v, axis=-1)
        ri_ref[:, pl.ds(0, k)] = jnp.concatenate(new_i, axis=-1)

    @pl.when(j == pl.num_programs(1) - 1)
    def _writeback():
        vals_ref[...] = rv_ref[:, pl.ds(0, k)]
        inds_ref[...] = ri_ref[:, pl.ds(0, k)]


def knn_topk_pallas(x: jax.Array, k: int, *, tm: int | None = None,
                    tn: int | None = None):
    """Returns (vals, inds), the per-row top-k of the zero-diagonal cosine-sim matrix."""
    n, d = x.shape
    assert k <= n, "topk k must be <= number of nodes"

    # Normalize once, outside the matmul grid.
    x_norm = normalize_rows_pallas(x)

    if tm is None:
        tm = _pick_tile(n, (256, 128, 64, 32, 16, 8))   # sublane-aligned (mult of 8)
    if tn is None:
        tn = _pick_tile(n, (512, 256, 128))             # lane-aligned (mult of 128)

    pad_w = max(128, ((k + 127) // 128) * 128)          # lane-aligned running buffer
    grid = (n // tm, n // tn)
    kernel = functools.partial(_knn_topk_kernel, tm=tm, tn=tn, k=k)

    vals, inds = pl.pallas_call(
        kernel,
        out_shape=(
            jax.ShapeDtypeStruct((n, k), jnp.float32),
            jax.ShapeDtypeStruct((n, k), jnp.int32),
        ),
        grid_spec=pltpu.PrefetchScalarGridSpec(
            num_scalar_prefetch=0,
            grid=grid,
            in_specs=[
                pl.BlockSpec((tm, d), lambda i, j: (i, 0)),  # row tile of x_norm
                pl.BlockSpec((tn, d), lambda i, j: (j, 0)),  # col tile of x_norm
            ],
            out_specs=[
                pl.BlockSpec((tm, k), lambda i, j: (i, 0)),  # resident across j
                pl.BlockSpec((tm, k), lambda i, j: (i, 0)),
            ],
            scratch_shapes=[
                pltpu.VMEM((tm, pad_w), jnp.float32),
                pltpu.VMEM((tm, pad_w), jnp.int32),
            ],
        ),
        compiler_params=pltpu.CompilerParams(
            dimension_semantics=("parallel", "arbitrary"),
        ),
    )(x_norm, x_norm)
    return vals, inds


# --------------------------------------------------------------------------
# HomologyGraphStats equivalent (knn_fast path, default flags)
# --------------------------------------------------------------------------
class HomologyGraphStatsPallas:
    def __init__(
        self,
        dataset: str,
        homology: str,
        knn_k: int,
        loop: bool,
        flow: str,
        force_undirected: bool,
        only_from_train: bool,
        no_test_test: bool,
        train_mask: jax.Array,
        valid_mask: jax.Array,
        test_mask: jax.Array,
    ):
        self.dataset = dataset
        self.homology = homology
        self.knn_k = knn_k
        self.loop = loop
        self.flow = flow
        self.force_undirected = force_undirected
        self.only_from_train = only_from_train
        self.no_test_test = no_test_test
        self.train_index = jnp.nonzero(train_mask)[0]
        self.valid_index = jnp.nonzero(valid_mask)[0]
        self.test_index = jnp.nonzero(test_mask)[0]

    def __call__(self, x: jax.Array):
        if self.homology != "knn_fast":
            raise ValueError("%s is not supported in this kernel" % self.homology)
        # TODO(synk): only_from_train / no_test_test / force_undirected paths need
        # dynamic-shape edge filtering & to_undirected dedup; not ported.
        assert not (self.only_from_train or self.no_test_test or self.force_undirected)

        n = x.shape[0]
        k = self.knn_k

        # ---- hot path in Pallas: fused cosine-sim + top-k, no N^2 in HBM ----
        vals, inds = knn_topk_pallas(x, k)

        # ---- glue: edge construction ----
        cols = inds.reshape(-1).astype(jnp.int32)
        values = vals.reshape(-1)
        rows = jnp.repeat(jnp.arange(n, dtype=jnp.int32), k)

        if self.flow == "source_to_target":
            edge_index = jnp.stack([cols, rows], axis=0)
        elif self.flow == "target_to_source":
            edge_index = jnp.stack([rows, cols], axis=0)
        else:
            raise ValueError("%s is not a valid flow" % self.flow)

        if self.loop:
            # add_self_loops: append (i, i) edges, edge_attr fill_value = 1.0
            loop_idx = jnp.arange(n, dtype=jnp.int32)
            self_loops = jnp.stack([loop_idx, loop_idx], axis=0)
            edge_index = jnp.concatenate([edge_index, self_loops], axis=1)
            edge_attr = jnp.concatenate(
                [values, jnp.ones((n,), dtype=values.dtype)], axis=0
            )
        else:
            edge_attr = values

        return edge_index, edge_attr


# --------------------------------------------------------------------------
# Demo
# --------------------------------------------------------------------------
if __name__ == "__main__":
    key = jax.random.PRNGKey(0)
    N, D, K = 64, 32, 4

    kx, _ = jax.random.split(key)
    x = jax.random.normal(kx, (N, D), dtype=jnp.float32)

    # deterministic train/valid/test split masks (unused in the default path)
    idx = jnp.arange(N)
    train_mask = idx < 40
    valid_mask = (idx >= 40) & (idx < 52)
    test_mask = idx >= 52

    # ---- reference (plain JAX, materializes N x N) ----
    xn = x / jnp.maximum(jnp.linalg.norm(x, axis=1, keepdims=True), 1e-12)
    ref = xn @ xn.T
    ref = ref * (1.0 - jnp.eye(N, dtype=ref.dtype))
    ref_vals, _ = jax.lax.top_k(ref, K)

    # ---- Pallas fused path sanity check ----
    vals, inds = knn_topk_pallas(x, K)
    jax.block_until_ready(vals)
    # top-k values must match the reference (order-insensitive to fp tie flips)
    assert jnp.max(jnp.abs(vals - ref_vals)) < 2e-3
    # every reported index must actually achieve its reported value
    rows = jnp.repeat(jnp.arange(N), K)
    assert jnp.max(jnp.abs(ref[rows, inds.reshape(-1)] - vals.reshape(-1))) < 2e-3

    module = HomologyGraphStatsPallas(
        dataset="synthetic",
        homology="knn_fast",
        knn_k=K,
        loop=True,
        flow="source_to_target",
        force_undirected=False,
        only_from_train=False,
        no_test_test=False,
        train_mask=train_mask,
        valid_mask=valid_mask,
        test_mask=test_mask,
    )

    edge_index, edge_attr = module(x)
    jax.block_until_ready(edge_index)
    jax.block_until_ready(edge_attr)

    assert edge_index.shape == (2, N * K + N)
    assert edge_attr.shape == (N * K + N,)
    # self-loop attrs are exactly 1.0
    assert jnp.all(edge_attr[N * K:] == 1.0)

    print("KERNEL_OK")
</pallas_src>

<mosaic_0001>
module attributes {stable_mosaic.version = 11 : i64} {
  func.func @_normalize_kernel(%arg0: i32, %arg1: memref<64x32xf32, #tpu.memory_space<vmem>>, %arg2: memref<64x32xf32, #tpu.memory_space<vmem>>) attributes {dimension_semantics = [#tpu.dimension_semantics<parallel>], iteration_bounds = array<i64: 1>, scalar_prefetch = 0 : i64, scratch_operands = 0 : i64, tpu.core_type = #tpu.core_type<tc>, window_params = [{transform_indices = @transform_0, window_bounds = array<i64: 64, 32>}, {transform_indices = @transform_1, window_bounds = array<i64: 64, 32>}]} {
    %c0 = arith.constant 0 : index
    %c0_0 = arith.constant 0 : index
    %0 = vector.load %arg1[%c0, %c0_0] : memref<64x32xf32, #tpu.memory_space<vmem>>, vector<64x32xf32>
    %1 = arith.mulf %0, %0 : vector<64x32xf32>
    %cst = arith.constant dense<0.000000e+00> : vector<64xf32>
    %2 = vector.multi_reduction <add>, %1, %cst [1] : vector<64x32xf32> to vector<64xf32>
    %3 = vector.shape_cast %2 : vector<64xf32> to vector<64x1xf32>
    %cst_1 = arith.constant 1.000000e-24 : f32
    %4 = vector.broadcast %cst_1 : f32 to vector<64x1xf32>
    %5 = arith.maximumf %3, %4 : vector<64x1xf32>
    %6 = math.rsqrt %5 : vector<64x1xf32>
    %7 = vector.broadcast %6 : vector<64x1xf32> to vector<64x32xf32>
    %8 = arith.mulf %0, %7 : vector<64x32xf32>
    %c0_2 = arith.constant 0 : index
    %c0_3 = arith.constant 0 : index
    %9 = vector.load %arg2[%c0_2, %c0_3] : memref<64x32xf32, #tpu.memory_space<vmem>>, vector<64x32xf32>
    tpu.vector_store %arg2[%c0_2, %c0_3], %8 {strides = array<i32>} : memref<64x32xf32, #tpu.memory_space<vmem>>, vector<64x32xf32>,
    return
  }
  func.func @transform_0(%arg0: i32) -> (i32, i32) {
    %c0_i32 = arith.constant 0 : i32
    %c0_i32_0 = arith.constant 0 : i32
    return %arg0, %c0_i32 : i32, i32
  }
  func.func @transform_1(%arg0: i32) -> (i32, i32) {
    %c0_i32 = arith.constant 0 : i32
    %c0_i32_0 = arith.constant 0 : i32
    return %arg0, %c0_i32 : i32, i32
  }
}

</mosaic_0001>

<llo_original>
// kernel: tpu_custom_call.1
$region0: #{tpu_custom_call.1}
  #allocation0 [shape = 'u32[]', space=smem, size = 0x4, offset = 0x4, fixed_abs, tag = 'smem constant byte address 0x4 - core index']
  #allocation1 [shape = 'u32[144,128]{1,0:T(1,128)}', space=vmem, size = 0x12000, scoped, tag = 'internal scratch']
  %s0 = inlined_call_operand.vmem [shape: f32[64,32], index: 0, kind: input, shape index: {}]
  %s1 = inlined_call_operand.vmem [shape: f32[64,32], index: 1, kind: output, shape index: {}]
  %s2 = sld [smem:[#allocation0]]
  $region14: #{tpu_custom_call.1} parent=0
    _
  %s4 = ssub.s32 1, %s2
  %s5 = scalar_select 0, %s4, %s2
  // Predicated region
  $region2: #{tpu_custom_call.1} parent=0 // pred_check
    _
  $region3: #{tpu_custom_call.1} parent=0 // pred_check_branch
    %7 = sbr.rel (0) target = $region5
  $region4: #{tpu_custom_call.1} parent=0 // pred_region
    _
  $region5: #{tpu_custom_call.1} parent=0 // pred_fallthru
    _
  %v8 = vld [vmem:[%s0] sm:$0xff]
  %v9 = vld [vmem:[%s0 + $0x8] sm:$0xff]
  %v10 = vld [vmem:[%s0 + $0x10] sm:$0xff]
  %v11 = vld [vmem:[%s0 + $0x18] sm:$0xff]
  %v12 = vld [vmem:[%s0 + $0x20] sm:$0xff]
  %v13 = vld [vmem:[%s0 + $0x28] sm:$0xff]
  %v14 = vld [vmem:[%s0 + $0x30] sm:$0xff]
  %v15 = vld [vmem:[%s0 + $0x38] sm:$0xff]
  %v16 = vmul.f32 %v8, %v8
  %v17 = vmul.f32 %v9, %v9
  %v18 = vmul.f32 %v10, %v10
  %v19 = vmul.f32 %v11, %v11
  %v20 = vmul.f32 %v12, %v12
  %v21 = vmul.f32 %v13, %v13
  %v22 = vmul.f32 %v14, %v14
  %v23 = vmul.f32 %v15, %v15
  %vm24 = vcmask 261120
  %v25 = vsel %vm24, %v16, 0.0
  %26 = vadd.xlane.f32.xlu0 %v25
  %v27 = vpop.xlane.xlu0 %26
  %v28 = vsel %vm24, %v17, 0.0
  %29 = vadd.xlane.f32.xlu0 %v28
  %v30 = vpop.xlane.xlu0 %29
  %v31 = vsel %vm24, %v18, 0.0
  %32 = vadd.xlane.f32.xlu0 %v31
  %v33 = vpop.xlane.xlu0 %32
  %v34 = vsel %vm24, %v19, 0.0
  %35 = vadd.xlane.f32.xlu0 %v34
  %v36 = vpop.xlane.xlu0 %35
  %v37 = vsel %vm24, %v20, 0.0
  %38 = vadd.xlane.f32.xlu0 %v37
  %v39 = vpop.xlane.xlu0 %38
  %v40 = vsel %vm24, %v21, 0.0
  %41 = vadd.xlane.f32.xlu0 %v40
  %v42 = vpop.xlane.xlu0 %41
  %v43 = vsel %vm24, %v22, 0.0
  %44 = vadd.xlane.f32.xlu0 %v43
  %v45 = vpop.xlane.xlu0 %44
  %v46 = vsel %vm24, %v23, 0.0
  %47 = vadd.xlane.f32.xlu0 %v46
  %v48 = vpop.xlane.xlu0 %47
  %v49 = vmax.f32 %v27, 1e-24
  %v50 = vmax.f32 %v30, 1e-24
  %v51 = vmax.f32 %v33, 1e-24
  %v52 = vmax.f32 %v36, 1e-24
  %v53 = vmax.f32 %v39, 1e-24
  %v54 = vmax.f32 %v42, 1e-24
  %v55 = vmax.f32 %v45, 1e-24
  %v56 = vmax.f32 %v48, 1e-24
  %v57 = vrsqrt.pop %v49
  %v58 = vrsqrt.pop %v50
  %v59 = vrsqrt.pop %v51
  %v60 = vrsqrt.pop %v52
  %v61 = vrsqrt.pop %v53
  %v62 = vrsqrt.pop %v54
  %v63 = vrsqrt.pop %v55
  %v64 = vrsqrt.pop %v56
  %v65 = vmul.f32 %v8, %v57
  %v66 = vmul.f32 %v9, %v58
  %v67 = vmul.f32 %v10, %v59
  %v68 = vmul.f32 %v11, %v60
  %v69 = vmul.f32 %v12, %v61
  %v70 = vmul.f32 %v13, %v62
  %v71 = vmul.f32 %v14, %v63
  %v72 = vmul.f32 %v15, %v64
  %73 = vst.msk [vmem:[%s1] sm:$0xff] %vm24, %v65
  %74 = vst.msk [vmem:[%s1 + $0x8] sm:$0xff] %vm24, %v66
  %75 = vst.msk [vmem:[%s1 + $0x10] sm:$0xff] %vm24, %v67
  %76 = vst.msk [vmem:[%s1 + $0x18] sm:$0xff] %vm24, %v68
  %77 = vst.msk [vmem:[%s1 + $0x20] sm:$0xff] %vm24, %v69
  %78 = vst.msk [vmem:[%s1 + $0x28] sm:$0xff] %vm24, %v70
  %79 = vst.msk [vmem:[%s1 + $0x30] sm:$0xff] %vm24, %v71
  %80 = vst.msk [vmem:[%s1 + $0x38] sm:$0xff] %vm24, %v72
  // Predicated region
  $region6: #{tpu_custom_call.1} parent=0 // pred_check
    _
  $region7: #{tpu_custom_call.1} parent=0 // pred_check_branch
    %82 = sbr.rel (0) target = $region9
  $region8: #{tpu_custom_call.1} parent=0 // pred_region
    _
  $region9: #{tpu_custom_call.1} parent=0 // pred_fallthru
    _
  // Predicated region
  $region10: #{tpu_custom_call.1} parent=0 // pred_check
    _
  $region11: #{tpu_custom_call.1} parent=0 // pred_check_branch
    %84 = sbr.rel (0) target = $region13
  $region12: #{tpu_custom_call.1} parent=0 // pred_region
    _
  $region13: #{tpu_custom_call.1} parent=0 // pred_fallthru
    _

</llo_original>
